<compile_context>
chip_gen: v5e
topology: v5e:2x2
jax: 0.10.0
libtpu: 0.0.40
codegen_flags: <defaults>
</compile_context>

<pallas_src>
import jax
import jax.numpy as jnp
from jax.experimental import pallas as pl
from jax.experimental.pallas import tpu as pltpu

EXTERNAL_VARIABLES = 3
STORAGE_CAP = 10
HUMANOID_CLASSES = 4
ACTION_DIM = 4
OUTPUT_SHAPE = EXTERNAL_VARIABLES + 2 * HUMANOID_CLASSES + ACTION_DIM  # 15

_STORAGE_FLAT = STORAGE_CAP * HUMANOID_CLASSES                         # 40
_SLAB_ROWS = EXTERNAL_VARIABLES + HUMANOID_CLASSES + _STORAGE_FLAT + ACTION_DIM  # 51

# Row offsets inside the packed feature-major input slab (51, B).
_V_LO = 0                                   # 0:3   variables
_P_LO = _V_LO + EXTERNAL_VARIABLES          # 3:7   humanoid_class_probs
_S_LO = _P_LO + HUMANOID_CLASSES            # 7:47  storage probs, row = s*4 + c
_A_LO = _S_LO + _STORAGE_FLAT               # 47:51 doable_actions

# Row offsets inside the feature-major output (15, B).
_O_V = 0
_O_P = _O_V + EXTERNAL_VARIABLES            # 3
_O_S = _O_P + HUMANOID_CLASSES              # 7
_O_A = _O_S + HUMANOID_CLASSES              # 11

_DEFAULT_BATCH_TILE = 4096   # (56+16) padded rows * 4 B * tb, x2 buffers ≈ 2.4 MiB
_MIN_PALLAS_BATCH = 512      # below this, plain XLA fuses the op for free


def _round_up(x, m):
    return ((x + m - 1) // m) * m


def _base_model_kernel(slab_ref, out_ref):
    """Feature-major block: slab_ref (51, tb) -> out_ref (15, tb)."""
    # Pass-throughs: contiguous sublane-range copies, lane-dense stores.
    out_ref[_O_V:_O_V + EXTERNAL_VARIABLES, :] = slab_ref[_V_LO:_P_LO, :]
    out_ref[_O_P:_O_P + HUMANOID_CLASSES, :] = slab_ref[_P_LO:_S_LO, :]
    out_ref[_O_A:_O_A + ACTION_DIM, :] = slab_ref[_A_LO:_A_LO + ACTION_DIM, :]

    # Storage-axis sum over s in (10, 4) -> (4,), as a depth-4 tree of VPU adds
    # on sublane ranges (rows = s*4 + c), instead of a 9-deep serial chain.
    xs = slab_ref[_S_LO:_A_LO, :]              # (40, tb)
    t = xs[0:20, :] + xs[20:40, :]             # s {0..4} + s {5..9}   -> 5 groups
    u = t[0:8, :] + t[8:16, :]                 # s' {0,1} + s' {2,3}   -> 2 groups
    v = u[0:4, :] + u[4:8, :]                  # -> 1 group
    out_ref[_O_S:_O_S + HUMANOID_CLASSES, :] = v + t[16:20, :]   # + s' = 4


def base_model_forward(inputs, *, batch_tile=_DEFAULT_BATCH_TILE,
                       force_pallas=False):
    """Pallas implementation of BaseModel.forward.

    inputs: dict with keys
      'variables'                    (B, 3)      float32
      'humanoid_class_probs'         (B, 4)      float32
      'vehicle_storage_class_probs'  (B, 10, 4)  float32
      'doable_actions'               (B, 4)      float32
    returns (B, 15) float32
    """
    x_v = inputs["variables"]
    x_p = inputs["humanoid_class_probs"]
    x_s = inputs["vehicle_storage_class_probs"]
    x_a = inputs["doable_actions"]

    B = x_v.shape[0]

    # Small-batch fast path: the pallas_call launch + one mostly-padded grid
    # step loses to XLA fusing this reduce+concat into its neighbors.
    if B < _MIN_PALLAS_BATCH and not force_pallas:
        return base_model_reference(inputs)

    # Pack everything into one feature-major (51, B) slab: one contiguous input
    # DMA stream per grid step instead of 4, and the batch sits on the lane
    # axis so all tiles are lane-dense. This is layout plumbing XLA fuses.
    x_s_flat = x_s.reshape(B, _STORAGE_FLAT)
    slab = jnp.concatenate([x_v.T, x_p.T, x_s_flat.T, x_a.T], axis=0)  # (51, B)

    # Batch tile on the lane axis: multiple of 128 (or full B when tiny), with
    # >= 2 grid steps when possible so both v7x TensorCores get work.
    if B <= 128:
        tb = B
    else:
        tb = min(batch_tile, _round_up(pl.cdiv(B, 2), 128))
    grid = (pl.cdiv(B, tb),)

    bytes_accessed = 4 * B * (_SLAB_ROWS + OUTPUT_SHAPE)
    cost = pl.CostEstimate(
        flops=B * (STORAGE_CAP - 1) * HUMANOID_CLASSES,
        transcendentals=0,
        bytes_accessed=bytes_accessed,
    )

    out_t = pl.pallas_call(
        _base_model_kernel,
        out_shape=jax.ShapeDtypeStruct((OUTPUT_SHAPE, B), x_v.dtype),
        grid=grid,
        in_specs=[pl.BlockSpec((_SLAB_ROWS, tb), lambda i: (0, i))],
        out_specs=pl.BlockSpec((OUTPUT_SHAPE, tb), lambda i: (0, i)),
        compiler_params=pltpu.CompilerParams(
            dimension_semantics=("parallel",),
        ),
        cost_estimate=cost,
    )(slab)

    return out_t.T  # (B, 15)


def base_model_reference(inputs):
    """Plain-JAX reference (mirrors the PyTorch forward exactly)."""
    x_v = inputs["variables"]
    x_p = inputs["humanoid_class_probs"]
    x_s = jnp.sum(inputs["vehicle_storage_class_probs"], axis=1)
    x_a = inputs["doable_actions"]
    return jnp.concatenate([x_v, x_p, x_s, x_a], axis=1)


def _make_inputs(key, batch):
    k_v, k_p, k_s, k_a = jax.random.split(key, 4)
    return {
        "variables": jax.random.normal(
            k_v, (batch, EXTERNAL_VARIABLES), jnp.float32),
        "humanoid_class_probs": jax.random.uniform(
            k_p, (batch, HUMANOID_CLASSES), jnp.float32),
        "vehicle_storage_class_probs": jax.random.uniform(
            k_s, (batch, STORAGE_CAP, HUMANOID_CLASSES), jnp.float32),
        "doable_actions": jax.random.uniform(
            k_a, (batch, ACTION_DIM), jnp.float32),
    }


if __name__ == "__main__":
    # BaseModel has no learnable parameters (__init__ only sets dimension
    # constants), so there are no weights to initialize.
    key = jax.random.PRNGKey(0)

    # batch=2: the tiny PPO rollout case (full-array block, single grid step).
    # batch=300: multi-step grid with a ragged last block (300 % 256 != 0).
    for batch in (2, 300):
        inputs = _make_inputs(key, batch)
        ref = base_model_reference(inputs)

        # Force the Pallas path so the kernel itself is compiled and executed.
        out = jax.block_until_ready(base_model_forward(inputs, force_pallas=True))
        assert out.shape == (batch, OUTPUT_SHAPE), out.shape
        assert jnp.allclose(out, ref, atol=1e-6, rtol=1e-6), "mismatch vs reference"

        # Default dispatch (small batches take the plain-XLA fast path).
        out_auto = jax.block_until_ready(base_model_forward(inputs))
        assert jnp.allclose(out_auto, ref, atol=1e-6, rtol=1e-6), "fast-path mismatch"

    print("KERNEL_OK")
</pallas_src>

<mosaic_0001>
module attributes {stable_mosaic.version = 11 : i64} {
  func.func @_base_model_kernel(%arg0: i32, %arg1: memref<51x2xf32, #tpu.memory_space<vmem>>, %arg2: memref<15x2xf32, #tpu.memory_space<vmem>>) attributes {dimension_semantics = [#tpu.dimension_semantics<parallel>], iteration_bounds = array<i64: 1>, scalar_prefetch = 0 : i64, scratch_operands = 0 : i64, tpu.core_type = #tpu.core_type<tc>, window_params = [{transform_indices = @transform_0, window_bounds = array<i64: 51, 2>}, {transform_indices = @transform_1, window_bounds = array<i64: 15, 2>}]} {
    %c0 = arith.constant 0 : index
    %c0_0 = arith.constant 0 : index
    %0 = vector.load %arg1[%c0, %c0_0] : memref<51x2xf32, #tpu.memory_space<vmem>>, vector<3x2xf32>
    %c0_1 = arith.constant 0 : index
    %c0_2 = arith.constant 0 : index
    %1 = vector.load %arg2[%c0_1, %c0_2] : memref<15x2xf32, #tpu.memory_space<vmem>>, vector<3x2xf32>
    tpu.vector_store %arg2[%c0_1, %c0_2], %0 {strides = array<i32>} : memref<15x2xf32, #tpu.memory_space<vmem>>, vector<3x2xf32>,
    %c3 = arith.constant 3 : index
    %c0_3 = arith.constant 0 : index
    %2 = vector.load %arg1[%c3, %c0_3] : memref<51x2xf32, #tpu.memory_space<vmem>>, vector<4x2xf32>
    %c3_4 = arith.constant 3 : index
    %c0_5 = arith.constant 0 : index
    %3 = vector.load %arg2[%c3_4, %c0_5] : memref<15x2xf32, #tpu.memory_space<vmem>>, vector<4x2xf32>
    tpu.vector_store %arg2[%c3_4, %c0_5], %2 {strides = array<i32>} : memref<15x2xf32, #tpu.memory_space<vmem>>, vector<4x2xf32>,
    %c47 = arith.constant 47 : index
    %c0_6 = arith.constant 0 : index
    %4 = vector.load %arg1[%c47, %c0_6] : memref<51x2xf32, #tpu.memory_space<vmem>>, vector<4x2xf32>
    %c11 = arith.constant 11 : index
    %c0_7 = arith.constant 0 : index
    %5 = vector.load %arg2[%c11, %c0_7] : memref<15x2xf32, #tpu.memory_space<vmem>>, vector<4x2xf32>
    tpu.vector_store %arg2[%c11, %c0_7], %4 {strides = array<i32>} : memref<15x2xf32, #tpu.memory_space<vmem>>, vector<4x2xf32>,
    %c7 = arith.constant 7 : index
    %c0_8 = arith.constant 0 : index
    %6 = vector.load %arg1[%c7, %c0_8] : memref<51x2xf32, #tpu.memory_space<vmem>>, vector<40x2xf32>
    %7 = vector.extract_strided_slice %6 {offsets = [0, 0], sizes = [20, 2], strides = [1, 1]} : vector<40x2xf32> to vector<20x2xf32>
    %8 = vector.extract_strided_slice %6 {offsets = [20, 0], sizes = [20, 2], strides = [1, 1]} : vector<40x2xf32> to vector<20x2xf32>
    %9 = arith.addf %7, %8 : vector<20x2xf32>
    %10 = vector.extract_strided_slice %9 {offsets = [0, 0], sizes = [8, 2], strides = [1, 1]} : vector<20x2xf32> to vector<8x2xf32>
    %11 = vector.extract_strided_slice %9 {offsets = [8, 0], sizes = [8, 2], strides = [1, 1]} : vector<20x2xf32> to vector<8x2xf32>
    %12 = arith.addf %10, %11 : vector<8x2xf32>
    %13 = vector.extract_strided_slice %12 {offsets = [0, 0], sizes = [4, 2], strides = [1, 1]} : vector<8x2xf32> to vector<4x2xf32>
    %14 = vector.extract_strided_slice %12 {offsets = [4, 0], sizes = [4, 2], strides = [1, 1]} : vector<8x2xf32> to vector<4x2xf32>
    %15 = arith.addf %13, %14 : vector<4x2xf32>
    %16 = vector.extract_strided_slice %9 {offsets = [16, 0], sizes = [4, 2], strides = [1, 1]} : vector<20x2xf32> to vector<4x2xf32>
    %17 = arith.addf %15, %16 : vector<4x2xf32>
    %c7_9 = arith.constant 7 : index
    %c0_10 = arith.constant 0 : index
    %18 = vector.load %arg2[%c7_9, %c0_10] : memref<15x2xf32, #tpu.memory_space<vmem>>, vector<4x2xf32>
    tpu.vector_store %arg2[%c7_9, %c0_10], %17 {strides = array<i32>} : memref<15x2xf32, #tpu.memory_space<vmem>>, vector<4x2xf32>,
    return
  }
  func.func @transform_0(%arg0: i32) -> (i32, i32) {
    %c0_i32 = arith.constant 0 : i32
    %c0_i32_0 = arith.constant 0 : i32
    return %c0_i32, %arg0 : i32, i32
  }
  func.func @transform_1(%arg0: i32) -> (i32, i32) {
    %c0_i32 = arith.constant 0 : i32
    %c0_i32_0 = arith.constant 0 : i32
    return %c0_i32, %arg0 : i32, i32
  }
}

</mosaic_0001>

<llo_original>
// kernel: tpu_custom_call.1
$region0: #{tpu_custom_call.1}
  #allocation0 [shape = 'u32[]', space=smem, size = 0x4, offset = 0x4, fixed_abs, tag = 'smem constant byte address 0x4 - core index']
  #allocation1 [shape = 'u32[72,128]{1,0:T(1,128)}', space=vmem, size = 0x9000, scoped, tag = 'internal scratch']
  %s0 = inlined_call_operand.vmem [shape: f32[51,2], index: 0, kind: input, shape index: {}]
  %s1 = inlined_call_operand.vmem [shape: f32[15,2], index: 1, kind: output, shape index: {}]
  %s2 = sld [smem:[#allocation0]]
  $region14: #{tpu_custom_call.1} parent=0
    _
  %s4 = ssub.s32 1, %s2
  %s5 = scalar_select 0, %s4, %s2
  // Predicated region
  $region2: #{tpu_custom_call.1} parent=0 // pred_check
    _
  $region3: #{tpu_custom_call.1} parent=0 // pred_check_branch
    %7 = sbr.rel (0) target = $region5
  $region4: #{tpu_custom_call.1} parent=0 // pred_region
    _
  $region5: #{tpu_custom_call.1} parent=0 // pred_fallthru
    _
  %v8 = vld [vmem:[%s0] sm:$0x7]
  %vm9 = vcmask 10240
  %10 = vst.msk [vmem:[%s1] sm:$0x7] %vm9, %v8
  %v11 = vld [vmem:[%s0 + $0x3] sm:$0xf]
  %vm12 = vcmask 11264
  %13 = vst.msk [vmem:[%s1 + $0x3] sm:$0xf] %vm12, %v11
  %v14 = vld [vmem:[%s0 + $0x2f] sm:$0xf]
  %15 = vst.msk [vmem:[%s1 + $0xb] sm:$0xf] %vm12, %v14
  %v16 = vld [vmem:[%s0 + $0x7] sm:$0xff]
  %v17 = vld [vmem:[%s0 + $0xf] sm:$0xff]
  %v18 = vld [vmem:[%s0 + $0x17] sm:$0xff]
  %v19 = vld [vmem:[%s0 + $0x1f] sm:$0xff]
  %v20 = vld [vmem:[%s0 + $0x27] sm:$0xff]
  %vm24 = vcmask 1043456
  %v25 = vrot.slane %v18, 4
  %v26 = vrot.slane %v19, 4
  %v27 = vsel %vm24, %v25, %v26
  %v28 = vrot.slane %v20, 4
  %v29 = vsel %vm24, %v26, %v28
  %v33 = vadd.f32 %v16, %v27
  %v34 = vadd.f32 %v17, %v29
  %v35 = vadd.f32 %v18, %v28
  %v36 = vadd.f32 %v33, %v34
  %v38 = vrot.slane %v36, 4
  %v40 = vadd.f32 %v36, %v38
  %v41 = vadd.f32 %v40, %v35
  %42 = vst.msk [vmem:[%s1 + $0x7] sm:$0xf] %vm12, %v41
  // Predicated region
  $region6: #{tpu_custom_call.1} parent=0 // pred_check
    _
  $region7: #{tpu_custom_call.1} parent=0 // pred_check_branch
    %44 = sbr.rel (0) target = $region9
  $region8: #{tpu_custom_call.1} parent=0 // pred_region
    _
  $region9: #{tpu_custom_call.1} parent=0 // pred_fallthru
    _
  // Predicated region
  $region10: #{tpu_custom_call.1} parent=0 // pred_check
    _
  $region11: #{tpu_custom_call.1} parent=0 // pred_check_branch
    %46 = sbr.rel (0) target = $region13
  $region12: #{tpu_custom_call.1} parent=0 // pred_region
    _
  $region13: #{tpu_custom_call.1} parent=0 // pred_fallthru
    _

</llo_original>
